<compile_context>
chip_gen: v7x
topology: tpu7x:2x2x1
jax: 0.10.0
libtpu: 0.0.40
codegen_flags: <defaults>
</compile_context>

<pallas_src>
import math
import numpy as np
import jax
import jax.numpy as jnp
from jax import lax
from jax.experimental import pallas as pl
from jax.experimental.pallas import tpu as pltpu


# ---------------------------------------------------------------------------
# Chip-aware sizing
# ---------------------------------------------------------------------------
def _tpu_vmem_capacity_bytes():
    try:
        return int(pltpu.get_tpu_info().vmem_capacity_bytes)
    except Exception:
        return 64 << 20            # conservative default (v7x per-TensorCore VMEM)


_VMEM_CAP = _tpu_vmem_capacity_bytes()
_VMEM_LIMIT = int(_VMEM_CAP * 0.8)        # raise the default scoped limit, keep headroom
_PIPELINE_BUDGET = int(_VMEM_CAP * 0.4)   # budget for the double-buffered blocks of one call


# ---------------------------------------------------------------------------
# Blur (upfirdn2d) constants
# ---------------------------------------------------------------------------
def _make_blur_kernel(k1d=(1, 3, 3, 1), factor=2):
    """make_kernel + Upsample scaling: 4x4 correlation kernel (used by the reference)."""
    k = np.asarray(k1d, dtype=np.float32)
    k2 = np.outer(k, k)
    k2 = k2 / k2.sum()
    return k2 * (factor ** 2)


def _upfirdn_matrices(k1d, Hs, Ws):
    """upfirdn2d(skip, make_kernel(k1d)*4, up=2, pad=(2,1)) == Uy @ skip @ Ux.

    The blur is separable, so zero-insertion upsampling, the (2,1) padding and the
    zero boundary are folded into two small constant matrices. Each output parity
    only touches its 2 relevant skip taps (polyphase) and all mixing runs on the MXU
    (no zero-inflated HBM buffer, no lane shuffles in-kernel)."""
    k = np.asarray(k1d, dtype=np.float64)
    kk = k * 2.0 / k.sum()          # 1-D separable factor, incl. the factor**2 gain
    L = k.shape[0]
    Ho, Wo = 2 * Hs, 2 * Ws
    uy = np.zeros((Ho, Hs), np.float32)
    for oy in range(Ho):
        for m in range(Hs):
            t = 2 * m - oy + 2
            if 0 <= t < L:
                uy[oy, m] = kk[t]
    ux = np.zeros((Ws, Wo), np.float32)
    for ox in range(Wo):
        for n in range(Ws):
            t = 2 * n - ox + 2
            if 0 <= t < L:
                ux[n, ox] = kk[t]
    return uy, ux


# ---------------------------------------------------------------------------
# Tile selection (generation aware via _PIPELINE_BUDGET)
# ---------------------------------------------------------------------------
def _pick_flat_tile(C, HW, x_itemsize, budget):
    """Lane tile for the flattened-HW conv: largest power-of-two multiple of 128
    whose double-buffered x + out blocks fit the VMEM budget."""
    per_col = 2 * (C * x_itemsize + 3 * 4)          # double-buffered x column + f32 out column
    t_max = max(128, budget // per_col)
    if HW <= t_max:
        return HW
    best, t = 128, 256
    while t <= min(t_max, HW):
        if HW % t == 0:
            best = t
        t *= 2
    return best


def _pick_row_tile(C, Ho, Wo, Hs, Ws, x_itemsize, budget):
    """Output-row tile for the fused skip kernel: divides Ho, keeps the flat x/out
    blocks lane aligned ((T_H*Wo) % 128 == 0) and the Uy tile sublane aligned
    (T_H % 8 == 0), fits the VMEM budget, and stays small enough for the static
    in-kernel row unroll."""
    fixed = 2 * (3 * Hs * Ws * 4 + Ws * Wo * 4)                      # skip + Ux (double buffered)
    per_row = 2 * (C * Wo * x_itemsize + 3 * Wo * 4 + Hs * 4)
    t_max = max(1, (budget - fixed) // per_row)
    t_max = min(t_max, 32, Ho)
    if Ho <= t_max:
        return Ho
    for t in range(t_max, 7, -1):
        if Ho % t == 0 and t % 8 == 0 and (t * Wo) % 128 == 0:
            return t
    return Ho


# ---------------------------------------------------------------------------
# Kernel 1: EqualLinear modulation -> per-batch modulated weight (B, 3, C)
# ---------------------------------------------------------------------------
def modulate_weights(style, w_mod, b_mod, w_conv, mod_scale, conv_scale,
                     out_dtype=jnp.bfloat16):
    """w[b, o, c] = conv_scale * w_conv[o, c] * (style[b] @ (w_mod*mod_scale).T + b_mod)[c].
    Hoisted out of the hot conv so it is not recomputed per HW tile."""
    B, S = style.shape
    C = w_mod.shape[0]
    style32 = style.astype(jnp.float32)
    w_mod_t = w_mod.T.astype(jnp.float32)             # (S, C)
    b_mod2 = b_mod.reshape(1, C).astype(jnp.float32)  # (1, C)
    w_conv2 = w_conv.astype(jnp.float32)              # (3, C)

    def kernel(style_ref, wmodT_ref, bmod_ref, wconv_ref, o_ref):
        s = jnp.dot(style_ref[...], wmodT_ref[...],
                    preferred_element_type=jnp.float32) * mod_scale + bmod_ref[...]
        w = (conv_scale * wconv_ref[...])[None, :, :] * s[:, None, :]   # (B, 3, C)
        o_ref[...] = w.astype(o_ref.dtype)

    return pl.pallas_call(
        kernel,
        out_shape=jax.ShapeDtypeStruct((B, 3, C), out_dtype),
        grid=(1,),
        in_specs=[
            pl.BlockSpec((B, S), lambda i: (0, 0)),
            pl.BlockSpec((S, C), lambda i: (0, 0)),
            pl.BlockSpec((1, C), lambda i: (0, 0)),
            pl.BlockSpec((3, C), lambda i: (0, 0)),
        ],
        out_specs=pl.BlockSpec((B, 3, C), lambda i: (0, 0, 0)),
    )(style32, w_mod_t, b_mod2, w_conv2)


# ---------------------------------------------------------------------------
# Kernel 2: modulated 1x1 conv + bias (no skip), HW tiled on the lane axis
# ---------------------------------------------------------------------------
def _conv_kernel(w_ref, x_ref, brgb_ref, o_ref):
    y = jnp.dot(w_ref[0], x_ref[0], preferred_element_type=jnp.float32)   # (3, T)
    o_ref[0] = (y + brgb_ref[...]).astype(o_ref.dtype)


def modulated_conv1x1(w, x_flat, b_rgb, out_dtype=jnp.float32):
    B, C, HW = x_flat.shape
    T = _pick_flat_tile(C, HW, x_flat.dtype.itemsize, _PIPELINE_BUDGET)
    grid = (B, pl.cdiv(HW, T))
    flops = 2 * 3 * C * HW * B
    bytes_accessed = int(x_flat.size * x_flat.dtype.itemsize
                         + w.size * w.dtype.itemsize
                         + B * 3 * HW * np.dtype(out_dtype).itemsize)
    # NOTE: if profiling shows exposed DMA on x, add pipeline_mode=pl.Buffered(3)
    # on the x BlockSpec (VMEM headroom permitting; usually not on v7x).
    return pl.pallas_call(
        _conv_kernel,
        out_shape=jax.ShapeDtypeStruct((B, 3, HW), out_dtype),
        grid=grid,
        in_specs=[
            pl.BlockSpec((1, 3, C), lambda b, t: (b, 0, 0)),
            pl.BlockSpec((1, C, T), lambda b, t: (b, 0, t)),
            pl.BlockSpec((3, 1), lambda b, t: (0, 0)),
        ],
        out_specs=pl.BlockSpec((1, 3, T), lambda b, t: (b, 0, t)),
        compiler_params=pltpu.CompilerParams(
            dimension_semantics=("parallel", "parallel"),
            vmem_limit_bytes=_VMEM_LIMIT),
        cost_estimate=pl.CostEstimate(flops=flops, transcendentals=0,
                                      bytes_accessed=bytes_accessed),
    )(w, x_flat, b_rgb)


# ---------------------------------------------------------------------------
# Kernel 3 (fused skip path): conv1x1 + bias + polyphase upsample-blur(skip)
# ---------------------------------------------------------------------------
def _make_fused_kernel(T_H, Wo):
    def kernel(w_ref, x_ref, skip_ref, uy_ref, ux_ref, brgb_ref, o_ref):
        # Modulated 1x1 conv on the flattened row tile: (3, C) @ (C, T_H*Wo), one
        # lane-dense store of the whole tile.
        y = jnp.dot(w_ref[0], x_ref[0], preferred_element_type=jnp.float32)
        o_ref[0] = (y + brgb_ref[...]).astype(o_ref.dtype)
        # Polyphase 2x upsample + blur of skip for the same output rows, as two small
        # constant matmuls per channel; added row-wise into the flat output tile.
        uy = uy_ref[...]          # (T_H, Hs)
        ux = ux_ref[...]          # (Ws, Wo)
        for c in range(3):                                   # static unroll (3)
            t = jnp.dot(uy, skip_ref[0, c], preferred_element_type=jnp.float32)   # (T_H, Ws)
            blur_c = jnp.dot(t, ux, preferred_element_type=jnp.float32)           # (T_H, Wo)
            for h in range(T_H):                             # static unroll (<= 32)
                lo = h * Wo
                o_ref[0, c:c + 1, lo:lo + Wo] = (
                    o_ref[0, c:c + 1, lo:lo + Wo] + blur_c[h:h + 1, :])
    return kernel


def modulated_conv1x1_blur_skip(w, x_flat, skip, b_rgb, uy, ux, Ho, Wo,
                                out_dtype=jnp.float32):
    B, C, HW = x_flat.shape
    _, _, Hs, Ws = skip.shape
    T_H = _pick_row_tile(C, Ho, Wo, Hs, Ws, x_flat.dtype.itemsize, _PIPELINE_BUDGET)
    T = T_H * Wo
    grid = (B, Ho // T_H)
    kernel = _make_fused_kernel(T_H, Wo)
    flops = 2 * B * 3 * (C * HW + Ho * Hs * Ws + Ho * Ws * Wo)
    bytes_accessed = int(x_flat.size * x_flat.dtype.itemsize
                         + w.size * w.dtype.itemsize
                         + skip.size * 4 + uy.size * 4 + ux.size * 4
                         + B * 3 * HW * np.dtype(out_dtype).itemsize)
    return pl.pallas_call(
        kernel,
        out_shape=jax.ShapeDtypeStruct((B, 3, HW), out_dtype),
        grid=grid,
        in_specs=[
            pl.BlockSpec((1, 3, C), lambda b, h: (b, 0, 0)),
            pl.BlockSpec((1, C, T), lambda b, h: (b, 0, h)),
            pl.BlockSpec((1, 3, Hs, Ws), lambda b, h: (b, 0, 0, 0)),   # resident across h
            pl.BlockSpec((T_H, Hs), lambda b, h: (h, 0)),
            pl.BlockSpec((Ws, Wo), lambda b, h: (0, 0)),
            pl.BlockSpec((3, 1), lambda b, h: (0, 0)),
        ],
        out_specs=pl.BlockSpec((1, 3, T), lambda b, h: (b, 0, h)),
        compiler_params=pltpu.CompilerParams(
            dimension_semantics=("parallel", "parallel"),
            vmem_limit_bytes=_VMEM_LIMIT),
        cost_estimate=pl.CostEstimate(flops=flops, transcendentals=0,
                                      bytes_accessed=bytes_accessed),
    )(w, x_flat, skip.astype(jnp.float32), uy, ux, b_rgb)


# ---------------------------------------------------------------------------
# Top-level ToRGB forward
# ---------------------------------------------------------------------------
def to_rgb(params, x, style, skip=None):
    """ToRGB: modulated (demodulate=False) 1x1 conv + bias, optionally adding the
    2x upsampled + blurred skip. x is kept in its incoming dtype (bf16 preferred)."""
    B, C, H, W = x.shape
    HW = H * W
    w = modulate_weights(style, params["w_mod"], params["b_mod"], params["w_conv"],
                         params["mod_scale"], params["conv_scale"])     # (B, 3, C) bf16
    x_flat = x.reshape(B, C, HW)
    b_rgb = params["b_rgb"].reshape(3, 1).astype(jnp.float32)
    if skip is None:
        out = modulated_conv1x1(w, x_flat, b_rgb)
    else:
        Hs, Ws = skip.shape[2], skip.shape[3]
        assert H == 2 * Hs and W == 2 * Ws
        uy, ux = _upfirdn_matrices(params["blur_kernel"], Hs, Ws)
        out = modulated_conv1x1_blur_skip(w, x_flat, skip, b_rgb,
                                          jnp.asarray(uy), jnp.asarray(ux), H, W)
    return out.reshape(B, 3, H, W)


def to_rgb_ref(params, x, style, skip=None):
    """Pure-JAX reference mirroring the PyTorch module semantics (f32 math; the
    modulated weight is rounded to bf16, matching how the kernel stores it)."""
    xf = x.astype(jnp.float32)
    s = style.astype(jnp.float32) @ (params["w_mod"] * params["mod_scale"]).T + params["b_mod"]
    w = params["conv_scale"] * params["w_conv"][None, :, :] * s[:, None, :]
    w = w.astype(jnp.bfloat16).astype(jnp.float32)
    out = jnp.einsum('boc,bchw->bohw', w, xf) + params["b_rgb"].reshape(1, 3, 1, 1)
    if skip is not None:
        k2 = jnp.asarray(_make_blur_kernel(params["blur_kernel"], factor=2))
        kern = jnp.broadcast_to(k2[None, None], (3, 1, 4, 4))
        # lhs_dilation drops the trailing zero row/col of torch's upsample, so use pad1+1
        blur = lax.conv_general_dilated(
            skip.astype(jnp.float32), kern, window_strides=(1, 1),
            padding=((2, 2), (2, 2)), lhs_dilation=(2, 2),
            feature_group_count=3,
            dimension_numbers=('NCHW', 'OIHW', 'NCHW'))
        out = out + blur
    return out


if __name__ == "__main__":
    B, C, S, H, W = 2, 8, 16, 16, 16

    key = jax.random.PRNGKey(0)
    k1, k2, k3, k4, k5, k6 = jax.random.split(key, 6)

    # ToRGB(in_channel=C, style_dim=S, upsample=True) parameters (deterministic init)
    params = dict(
        w_mod=jax.random.normal(k1, (C, S), jnp.float32),      # EqualLinear(S, C) weight
        b_mod=jnp.ones((C,), jnp.float32),                      # EqualLinear bias (bias_init=1)
        w_conv=jax.random.normal(k2, (3, C), jnp.float32),      # ModulatedConv2d weight (1,3,C,1,1) squeezed
        b_rgb=0.1 * jax.random.normal(k6, (3,), jnp.float32),   # ToRGB bias (1,3,1,1)
        mod_scale=1.0 / math.sqrt(S),                            # EqualLinear scale
        conv_scale=1.0 / math.sqrt(C * 1 ** 2),                  # ModulatedConv2d scale (kernel_size=1)
        blur_kernel=(1, 3, 3, 1),                                # Upsample blur (separable)
    )

    x = jax.random.normal(k3, (B, C, H, W), jnp.float32).astype(jnp.bfloat16)
    style = jax.random.normal(k4, (B, S), jnp.float32)
    skip = jax.random.normal(k5, (B, 3, H // 2, W // 2), jnp.float32)

    out_noskip = jax.block_until_ready(to_rgb(params, x, style, None))
    out_skip = jax.block_until_ready(to_rgb(params, x, style, skip))

    ref_noskip = to_rgb_ref(params, x, style, None)
    ref_skip = to_rgb_ref(params, x, style, skip)

    assert out_noskip.shape == (B, 3, H, W) and out_noskip.dtype == jnp.float32
    assert out_skip.shape == (B, 3, H, W)
    # bf16 weight/activation storage -> tolerance per perf-review guidance
    np.testing.assert_allclose(np.asarray(out_noskip), np.asarray(ref_noskip),
                               rtol=2e-2, atol=2e-2)
    np.testing.assert_allclose(np.asarray(out_skip), np.asarray(ref_skip),
                               rtol=2e-2, atol=2e-2)
    print("KERNEL_OK")
</pallas_src>

<mosaic_0001>
module attributes {stable_mosaic.version = 11 : i64} {
  func.func @kernel(%arg0: i32, %arg1: memref<2x16xf32, #tpu.memory_space<vmem>>, %arg2: memref<16x8xf32, #tpu.memory_space<vmem>>, %arg3: memref<1x8xf32, #tpu.memory_space<vmem>>, %arg4: memref<3x8xf32, #tpu.memory_space<vmem>>, %arg5: memref<2x3x8xbf16, #tpu.memory_space<vmem>>) attributes {dimension_semantics = [#tpu.dimension_semantics<arbitrary>], iteration_bounds = array<i64: 1>, scalar_prefetch = 0 : i64, scratch_operands = 0 : i64, tpu.core_type = #tpu.core_type<tc>, window_params = [{pipeline_mode = #tpu.pipeline_mode<synchronous>, transform_indices = @transform_0, window_bounds = array<i64: 2, 16>}, {pipeline_mode = #tpu.pipeline_mode<synchronous>, transform_indices = @transform_1, window_bounds = array<i64: 16, 8>}, {pipeline_mode = #tpu.pipeline_mode<synchronous>, transform_indices = @transform_2, window_bounds = array<i64: 1, 8>}, {pipeline_mode = #tpu.pipeline_mode<synchronous>, transform_indices = @transform_3, window_bounds = array<i64: 3, 8>}, {pipeline_mode = #tpu.pipeline_mode<synchronous>, transform_indices = @transform_4, window_bounds = array<i64: 2, 3, 8>}]} {
    %c0 = arith.constant 0 : index
    %c0_0 = arith.constant 0 : index
    %0 = vector.load %arg1[%c0, %c0_0] : memref<2x16xf32, #tpu.memory_space<vmem>>, vector<2x16xf32>
    %c0_1 = arith.constant 0 : index
    %c0_2 = arith.constant 0 : index
    %1 = vector.load %arg2[%c0_1, %c0_2] : memref<16x8xf32, #tpu.memory_space<vmem>>, vector<16x8xf32>
    %cst = arith.constant dense<0.000000e+00> : vector<2x8xf32>
    %2 = tpu.matmul %0, %1, %cst {dimension_numbers = #tpu.dot_dimension_numbers<[1], [0], [0], [1], [0, 0, 1, 1], [], []>} : vector<2x16xf32>, vector<16x8xf32>, vector<2x8xf32> -> vector<2x8xf32>
    %cst_3 = arith.constant 2.500000e-01 : f32
    %3 = vector.broadcast %cst_3 : f32 to vector<2x8xf32>
    %4 = arith.mulf %2, %3 : vector<2x8xf32>
    %c0_4 = arith.constant 0 : index
    %c0_5 = arith.constant 0 : index
    %5 = vector.load %arg3[%c0_4, %c0_5] : memref<1x8xf32, #tpu.memory_space<vmem>>, vector<1x8xf32>
    %6 = vector.broadcast %5 : vector<1x8xf32> to vector<2x8xf32>
    %7 = arith.addf %4, %6 : vector<2x8xf32>
    %c0_6 = arith.constant 0 : index
    %c0_7 = arith.constant 0 : index
    %8 = vector.load %arg4[%c0_6, %c0_7] : memref<3x8xf32, #tpu.memory_space<vmem>>, vector<3x8xf32>
    %cst_8 = arith.constant 0.353553385 : f32
    %9 = vector.broadcast %cst_8 : f32 to vector<3x8xf32>
    %10 = arith.mulf %9, %8 : vector<3x8xf32>
    %11 = vector.shape_cast %10 : vector<3x8xf32> to vector<1x3x8xf32>
    %12 = vector.shape_cast %7 : vector<2x8xf32> to vector<2x1x8xf32>
    %13 = vector.broadcast %11 : vector<1x3x8xf32> to vector<2x3x8xf32>
    %14 = vector.broadcast %12 : vector<2x1x8xf32> to vector<2x3x8xf32>
    %15 = arith.mulf %13, %14 : vector<2x3x8xf32>
    %16 = arith.truncf %15 : vector<2x3x8xf32> to vector<2x3x8xbf16>
    %c0_9 = arith.constant 0 : index
    %c0_10 = arith.constant 0 : index
    %c0_11 = arith.constant 0 : index
    %17 = vector.load %arg5[%c0_9, %c0_10, %c0_11] : memref<2x3x8xbf16, #tpu.memory_space<vmem>>, vector<2x3x8xbf16>
    tpu.vector_store %arg5[%c0_9, %c0_10, %c0_11], %16 {strides = array<i32>} : memref<2x3x8xbf16, #tpu.memory_space<vmem>>, vector<2x3x8xbf16>,
    return
  }
  func.func @transform_0(%arg0: i32) -> (i32, i32) {
    %c0_i32 = arith.constant 0 : i32
    %c0_i32_0 = arith.constant 0 : i32
    %c0_i32_1 = arith.constant 0 : i32
    return %c0_i32, %c0_i32_0 : i32, i32
  }
  func.func @transform_1(%arg0: i32) -> (i32, i32) {
    %c0_i32 = arith.constant 0 : i32
    %c0_i32_0 = arith.constant 0 : i32
    %c0_i32_1 = arith.constant 0 : i32
    return %c0_i32, %c0_i32_0 : i32, i32
  }
  func.func @transform_2(%arg0: i32) -> (i32, i32) {
    %c0_i32 = arith.constant 0 : i32
    %c0_i32_0 = arith.constant 0 : i32
    %c0_i32_1 = arith.constant 0 : i32
    return %c0_i32, %c0_i32_0 : i32, i32
  }
  func.func @transform_3(%arg0: i32) -> (i32, i32) {
    %c0_i32 = arith.constant 0 : i32
    %c0_i32_0 = arith.constant 0 : i32
    %c0_i32_1 = arith.constant 0 : i32
    return %c0_i32, %c0_i32_0 : i32, i32
  }
  func.func @transform_4(%arg0: i32) -> (i32, i32, i32) {
    %c0_i32 = arith.constant 0 : i32
    %c0_i32_0 = arith.constant 0 : i32
    %c0_i32_1 = arith.constant 0 : i32
    %c0_i32_2 = arith.constant 0 : i32
    return %c0_i32, %c0_i32_0, %c0_i32_1 : i32, i32, i32
  }
}

</mosaic_0001>

<llo_original>
// kernel: tpu_custom_call.1
$region0: #{tpu_custom_call.1}
  #allocation0 [shape = 'u32[]', space=smem, size = 0x4, offset = 0x4, fixed_abs, tag = 'smem constant byte address 0x4 - core index']
  #allocation1 [shape = 'u32[144,128]{1,0:T(1,128)}', space=vmem, size = 0x12000, scoped, tag = 'internal scratch']
  %s0 = inlined_call_operand.vmem [shape: f32[2,16], index: 0, kind: input, shape index: {}]
  %s1 = inlined_call_operand.vmem [shape: f32[16,8], index: 1, kind: input, shape index: {}]
  %s2 = inlined_call_operand.vmem [shape: f32[1,8], index: 2, kind: input, shape index: {}]
  %s3 = inlined_call_operand.vmem [shape: f32[3,8], index: 3, kind: input, shape index: {}]
  %s4 = inlined_call_operand.vmem [shape: bf16[2,3,8], index: 4, kind: output, shape index: {}]
  %s5 = sld [smem:[#allocation0]]
  $region26: #{tpu_custom_call.1} parent=0
    _
  %s7 = ssub.s32 1, %s5
  %s8 = scalar_select 0, %s7, %s5
  // Predicated region
  $region2: #{tpu_custom_call.1} parent=0 // pred_check
    _
  $region3: #{tpu_custom_call.1} parent=0 // pred_check_branch
    %10 = sbr.rel (0) target = $region5
  $region4: #{tpu_custom_call.1} parent=0 // pred_region
    _
  $region5: #{tpu_custom_call.1} parent=0 // pred_fallthru
    _
  // Predicated region
  $region6: #{tpu_custom_call.1} parent=0 // pred_check
    _
  $region7: #{tpu_custom_call.1} parent=0 // pred_check_branch
    %12 = sbr.rel (0) target = $region9
  $region8: #{tpu_custom_call.1} parent=0 // pred_region
    _
  $region9: #{tpu_custom_call.1} parent=0 // pred_fallthru
    _
  // Predicated region
  $region10: #{tpu_custom_call.1} parent=0 // pred_check
    _
  $region11: #{tpu_custom_call.1} parent=0 // pred_check_branch
    %14 = sbr.rel (0) target = $region13
  $region12: #{tpu_custom_call.1} parent=0 // pred_region
    _
  $region13: #{tpu_custom_call.1} parent=0 // pred_fallthru
    _
  // Predicated region
  $region14: #{tpu_custom_call.1} parent=0 // pred_check
    _
  $region15: #{tpu_custom_call.1} parent=0 // pred_check_branch
    %16 = sbr.rel (0) target = $region17
  $region16: #{tpu_custom_call.1} parent=0 // pred_region
    _
  $region17: #{tpu_custom_call.1} parent=0 // pred_fallthru
    _
  %v17 = vld [vmem:[%s0] sm:$0x3]
  %v18 = vld [vmem:[%s1] sm:$0xff]
  %v19 = vld [vmem:[%s1 + $0x8] sm:$0xff]
  %vm20 = vcmask 130048
  %v22 = vsel %vm20, %v17, 0
  %24 = vmatprep.subr.mxu0 0.0
  %25 = vmatpush1.msra.mxu0 %v18
  %26 = vmatprep.subr.mxu0 0.0
  %27 = vmatpush1.msra.mxu0 %v19
  %28 = vmatprep.subr.mxu0 0.0
  %29 = vmatpush1.msra.mxu0 0.0
  %30 = vmatprep.subr.mxu0 0.0
  %31 = vmatpush1.msra.mxu0 0.0
  %32 = vmatprep.subr.mxu0 0.0
  %33 = vmatpush1.msra.mxu0 0.0
  %34 = vmatprep.subr.mxu0 0.0
  %35 = vmatpush1.msra.mxu0 0.0
  %36 = vmatprep.subr.mxu0 0.0
  %37 = vmatpush1.msra.mxu0 0.0
  %38 = vmatprep.subr.mxu0 0.0
  %39 = vmatpush1.msra.mxu0 0.0
  %40 = vmatprep.subr.mxu0 0.0
  %41 = vmatpush1.msra.mxu0 0.0
  %42 = vmatprep.subr.mxu0 0.0
  %43 = vmatpush1.msra.mxu0 0.0
  %44 = vmatprep.subr.mxu0 0.0
  %45 = vmatpush1.msra.mxu0 0.0
  %46 = vmatprep.subr.mxu0 0.0
  %47 = vmatpush1.msra.mxu0 0.0
  %48 = vmatprep.subr.mxu0 0.0
  %49 = vmatpush1.msra.mxu0 0.0
  %50 = vmatprep.subr.mxu0 0.0
  %51 = vmatpush1.msra.mxu0 0.0
  %52 = vmatprep.subr.mxu0 0.0
  %53 = vmatpush1.msra.mxu0 0.0
  %54 = vmatprep.subr.mxu0 0.0
  %55 = vmatpush1.msra.mxu0 0.0
  %56 = vmatprep.subr.mxu0 0.0
  %57 = vmatpush1.msra.mxu0 0.0
  %58 = vmatprep.subr.mxu0 0.0
  %59 = vmatpush1.msra.mxu0 0.0
  %60 = vmatprep.subr.mxu0 0.0
  %61 = vmatpush1.msra.mxu0 0.0
  %62 = vmatprep.subr.mxu0 0.0
  %63 = vmatpush1.msra.mxu0 0.0
  %64 = vmatprep.subr.mxu0 0.0
  %65 = vmatpush1.msra.mxu0 0.0
  %66 = vmatprep.subr.mxu0 0.0
  %67 = vmatpush1.msra.mxu0 0.0
  %68 = vmatprep.subr.mxu0 0.0
  %69 = vmatpush1.msra.mxu0 0.0
  %70 = vmatprep.subr.mxu0 0.0
  %71 = vmatpush1.msra.mxu0 0.0
  %72 = vmatprep.subr.mxu0 0.0
  %73 = vmatpush1.msra.mxu0 0.0
  %74 = vmatprep.subr.mxu0 0.0
  %75 = vmatpush1.msra.mxu0 0.0
  %76 = vmatprep.subr.mxu0 0.0
  %77 = vmatpush1.msra.mxu0 0.0
  %78 = vmatprep.subr.mxu0 0.0
  %79 = vmatpush1.msra.mxu0 0.0
  %80 = vmatprep.subr.mxu0 0.0
  %81 = vmatpush1.msra.mxu0 0.0
  %82 = vmatprep.subr.mxu0 0.0
  %83 = vmatpush1.msra.mxu0 0.0
  %84 = vmatprep.subr.mxu0 0.0
  %85 = vmatpush1.msra.mxu0 0.0
  %86 = vmatprep.subr.mxu0 0.0
  %87 = vmatpush1.msra.mxu0 0.0
  %88 = vmatprep.mubr.f32.mxu0 0.0
  %89 = vmatmul.mubr.f32.gmra.mrb[0].mxu0 %v22
  %v90 = vpop.f32.mrb[0].mxu0
  %v91 = vadd.f32 0.0, %v90
  %v92 = vpop.f32.mrb[0].mxu0
  %93 = vdwg.mxu0
  %v94 = vmul.f32 %v91, 0.25
  %v95 = vld [vmem:[%s2] sm:$0x1]
  %v97 = vlaneseq
  %v98 = vshrl.u32 %v97, 7
  %v99 = vsub.s32 0, %v98
  %v100 = vrot.slane %v95, %v99
  %v102 = vadd.f32 %v94, %v100
  %v103 = vld [vmem:[%s3] sm:$0x7]
  %v104 = vmul.f32 %v103, 0.35355338
  %v107 = vunpack.c.l.s4 1966171168
  %v108 = vunpack.c.0.s8 %v107
  %v109 = vlaneseq
  %v110 = vshrl.u32 %v109, 7
  %v111 = vsub.s32 %v108, %v110
  %v112 = vrot.slane %v102, %v111
  %v113 = vcombine.high %v112, %v112
  %v115 = vunpack.c.l.s4 1966171168
  %v116 = vunpack.c.0.s8 %v115
  %v117 = vlaneseq
  %v118 = vshrl.u32 %v117, 7
  %v119 = vsub.s32 %v116, %v118
  %v120 = vrot.slane %v112, %v119
  %v122 = vunpack.c.l.s4 1966171168
  %v123 = vunpack.c.0.s8 %v122
  %v124 = vlaneseq
  %v125 = vshrl.u32 %v124, 7
  %v126 = vsub.s32 %v123, %v125
  %v127 = vrot.slane %v113, %v126
  %v128 = vlaneseq
  %v129 = vshrl.u32 %v128, 7
  %v130 = vsub.s32 0, %v129
  %v131 = vrot.slane %v120, %v130
  %v132 = vlaneseq
  %v133 = vshrl.u32 %v132, 7
  %v134 = vsub.s32 0, %v133
  %v135 = vrot.slane %v127, %v134
  %v138 = vmul.f32 %v104, %v131
  %v139 = vmul.f32 %v104, %v135
  %v140 = vpack.c.bf16 %v138, %v138
  %v141 = vpack.c.bf16 %v139, %v139
  %vm142 = vcmask 58368
  %vm143 = vsmask.f32 1280
  %vm144 = vmand %vm142, %vm143
  %v145 = vld [vmem:[%s4] sm:$0x3]
  %v146 = vsel %vm144, %v140, %v145
  %147 = vst [vmem:[%s4] sm:$0x3] %v146
  %v148 = vld [vmem:[%s4 + $0x2] sm:$0x3]
  %v149 = vsel %vm144, %v141, %v148
  %150 = vst [vmem:[%s4 + $0x2] sm:$0x3] %v149
  // Predicated region
  $region18: #{tpu_custom_call.1} parent=0 // pred_check
    _
  $region19: #{tpu_custom_call.1} parent=0 // pred_check_branch
    %152 = sbr.rel (0) target = $region21
  $region20: #{tpu_custom_call.1} parent=0 // pred_region
    _
  $region21: #{tpu_custom_call.1} parent=0 // pred_fallthru
    _
  // Predicated region
  $region22: #{tpu_custom_call.1} parent=0 // pred_check
    _
  $region23: #{tpu_custom_call.1} parent=0 // pred_check_branch
    %154 = sbr.rel (0) target = $region25
  $region24: #{tpu_custom_call.1} parent=0 // pred_region
    _
  $region25: #{tpu_custom_call.1} parent=0 // pred_fallthru
    _

</llo_original>
